<compile_context>
chip_gen: v7x
topology: tpu7x:2x2x1
jax: 0.10.0
libtpu: 0.0.40
codegen_flags: <defaults>
</compile_context>

<pallas_src>
import jax
import jax.numpy as jnp
from jax.experimental import pallas as pl
from jax.experimental.pallas import tpu as pltpu

# ---------------------------------------------------------------------------
# Encoder configuration (shapes implied by the chosen layer list)
# ---------------------------------------------------------------------------
IN_DIM = 64
HID_DIM = 32
MID_DIM = 16
LAT_DIM = 8

MAX_BATCH_TILE = 1024  # rows of x per grid step (upper clamp)
MIN_BATCH_TILE = 128   # sublane-friendly minimum


def encoder_kernel(x_ref, w1_ref, b1_ref, w2_ref, b2_ref, w3_ref, b3_ref, out_ref):
    """Fused Linear->ReLU->Linear->ReLU->Linear for one batch tile.

    Layout (batch on sublanes, natural PyTorch I/O layout, no transposes):
        x_ref   [Bt, IN_DIM]   f32   (cast to bf16 in-kernel for the MXU)
        wN_ref  [in, out]      bf16  (pre-transposed once in prepare_params)
        bN_ref  [1, out]       f32   (broadcast over batch rows)
        out_ref [Bt, LAT_DIM]  f32
    """
    x = x_ref[...].astype(jnp.bfloat16)  # in-kernel cast; HBM read stays one f32 pass

    # Layer 1: Linear(64, 32) + ReLU   (bf16 MXU, f32 accumulate, f32 epilogue)
    h = jnp.dot(x, w1_ref[...], preferred_element_type=jnp.float32)
    h = jnp.maximum(h + b1_ref[...], 0.0)

    # Layer 2: Linear(32, 16) + ReLU
    h = jnp.dot(h.astype(jnp.bfloat16), w2_ref[...],
                preferred_element_type=jnp.float32)
    h = jnp.maximum(h + b2_ref[...], 0.0)

    # Layer 3: Linear(16, 8)  (latent code, no activation)
    h = jnp.dot(h.astype(jnp.bfloat16), w3_ref[...],
                preferred_element_type=jnp.float32)
    out_ref[...] = (h + b3_ref[...]).astype(out_ref.dtype)


def prepare_params(params):
    """One-time prep of PyTorch-native params for the kernel.

    params: (W1 [32,64], b1 [32], W2 [16,32], b2 [16], W3 [8,16], b3 [8]) in f32.
    Returns ([in,out] bf16 weights, [1,out] f32 biases).  Call once, reuse.
    """
    w1, b1, w2, b2, w3, b3 = params
    return (
        jnp.asarray(w1, jnp.float32).T.astype(jnp.bfloat16),
        jnp.asarray(b1, jnp.float32).reshape(1, HID_DIM),
        jnp.asarray(w2, jnp.float32).T.astype(jnp.bfloat16),
        jnp.asarray(b2, jnp.float32).reshape(1, MID_DIM),
        jnp.asarray(w3, jnp.float32).T.astype(jnp.bfloat16),
        jnp.asarray(b3, jnp.float32).reshape(1, LAT_DIM),
    )


def _pick_batch_tile(batch):
    """Largest tile <= MAX_BATCH_TILE such that the grid has >=2 steps when
    B allows it (v7x has 2 TensorCores; single-step grids idle one of them)."""
    half = pl.cdiv(batch, 2)
    tile = pl.cdiv(half, MIN_BATCH_TILE) * MIN_BATCH_TILE  # round up to 128
    return max(MIN_BATCH_TILE, min(MAX_BATCH_TILE, tile))


def encoder_forward(x, prepared_params, *, batch_tile=None):
    """Run the fused encoder.

    x: [B, IN_DIM] float32 (natural layout; no wrapper-side cast/transpose/pad).
    prepared_params: output of prepare_params().
    Returns latent [B, LAT_DIM] float32.
    """
    B, din = x.shape
    assert din == IN_DIM, f"expected {IN_DIM} input features, got {din}"

    w1b, b1c, w2b, b2c, w3b, b3c = prepared_params

    tile = batch_tile if batch_tile is not None else _pick_batch_tile(B)
    assert tile % MIN_BATCH_TILE == 0, "batch_tile must be a multiple of 128"

    grid = (pl.cdiv(B, tile),)  # ragged tail handled by Pallas block masking

    # Weights/biases: constant-index full blocks (resident across grid steps).
    full = lambda shape: pl.BlockSpec(shape, lambda i: (0, 0))

    return pl.pallas_call(
        encoder_kernel,
        out_shape=jax.ShapeDtypeStruct((B, LAT_DIM), jnp.float32),
        grid_spec=pltpu.PrefetchScalarGridSpec(
            num_scalar_prefetch=0,
            grid=grid,
            in_specs=[
                pl.BlockSpec((tile, IN_DIM), lambda i: (i, 0)),  # x tile (f32)
                full((IN_DIM, HID_DIM)),                         # W1^T
                full((1, HID_DIM)),                              # b1
                full((HID_DIM, MID_DIM)),                        # W2^T
                full((1, MID_DIM)),                              # b2
                full((MID_DIM, LAT_DIM)),                        # W3^T
                full((1, LAT_DIM)),                              # b3
            ],
            out_specs=pl.BlockSpec((tile, LAT_DIM), lambda i: (i, 0)),
        ),
        compiler_params=pltpu.CompilerParams(
            dimension_semantics=("parallel",),  # batch tiles split across TCs on v7x
        ),
    )(x, w1b, b1c, w2b, b2c, w3b, b3c)


def init_linear(key, fan_in, fan_out):
    """nn.Linear default init: U(-1/sqrt(fan_in), +1/sqrt(fan_in)).

    Returns PyTorch-native (W [fan_out, fan_in], bias [fan_out]) in f32.
    """
    kw, kb = jax.random.split(key)
    bound = 1.0 / jnp.sqrt(jnp.float32(fan_in))
    w = jax.random.uniform(kw, (fan_out, fan_in), jnp.float32, -bound, bound)
    b = jax.random.uniform(kb, (fan_out,), jnp.float32, -bound, bound)
    return w, b


def reference_forward(x, params):
    """Plain-JAX reference of the same Sequential stack with matching bf16 math."""
    w1, b1, w2, b2, w3, b3 = params
    xb = x.astype(jnp.bfloat16)
    h = jnp.dot(xb, w1.astype(jnp.bfloat16).T,
                preferred_element_type=jnp.float32) + b1
    h = jnp.maximum(h, 0.0)
    h = jnp.dot(h.astype(jnp.bfloat16), w2.astype(jnp.bfloat16).T,
                preferred_element_type=jnp.float32) + b2
    h = jnp.maximum(h, 0.0)
    h = jnp.dot(h.astype(jnp.bfloat16), w3.astype(jnp.bfloat16).T,
                preferred_element_type=jnp.float32) + b3
    return h


if __name__ == "__main__":
    key = jax.random.PRNGKey(0)
    k_x, k1, k2, k3 = jax.random.split(key, 4)

    # Parameters for Linear(64,32), Linear(32,16), Linear(16,8) — PyTorch-native.
    w1, b1 = init_linear(k1, IN_DIM, HID_DIM)
    w2, b2 = init_linear(k2, HID_DIM, MID_DIM)
    w3, b3 = init_linear(k3, MID_DIM, LAT_DIM)
    params = (w1, b1, w2, b2, w3, b3)
    prepared = prepare_params(params)  # one-time cast/transpose, reused below

    # Small deterministic example input: [batch, features].
    # 256 rows -> auto tile 128, 2 grid steps (exercises the parallel pipeline).
    BATCH = 256
    x = jax.random.normal(k_x, (BATCH, IN_DIM), dtype=jnp.float32)

    out = jax.block_until_ready(encoder_forward(x, prepared))
    ref = reference_forward(x, params)
    assert out.shape == (BATCH, LAT_DIM), out.shape
    assert jnp.allclose(out, ref, atol=1e-2, rtol=1e-2), "mismatch vs reference"

    # Ragged batch (no wrapper-side pad): 200 rows -> tile 128, 2 steps,
    # masked tail block on both the x read and the latent write.
    B2 = 200
    x2 = jax.random.normal(k_x, (B2, IN_DIM), dtype=jnp.float32)
    out2 = jax.block_until_ready(encoder_forward(x2, prepared))
    ref2 = reference_forward(x2, params)
    assert out2.shape == (B2, LAT_DIM), out2.shape
    assert jnp.allclose(out2, ref2, atol=1e-2, rtol=1e-2), "ragged-batch mismatch"

    print("KERNEL_OK")
</pallas_src>

<mosaic_0001>
module attributes {stable_mosaic.version = 11 : i64} {
  func.func @encoder_kernel(%arg0: i32, %arg1: memref<128x64xf32, #tpu.memory_space<vmem>>, %arg2: memref<64x32xbf16, #tpu.memory_space<vmem>>, %arg3: memref<1x32xf32, #tpu.memory_space<vmem>>, %arg4: memref<32x16xbf16, #tpu.memory_space<vmem>>, %arg5: memref<1x16xf32, #tpu.memory_space<vmem>>, %arg6: memref<16x8xbf16, #tpu.memory_space<vmem>>, %arg7: memref<1x8xf32, #tpu.memory_space<vmem>>, %arg8: memref<128x8xf32, #tpu.memory_space<vmem>>) attributes {dimension_semantics = [#tpu.dimension_semantics<parallel>], iteration_bounds = array<i64: 2>, scalar_prefetch = 0 : i64, scratch_operands = 0 : i64, tpu.core_type = #tpu.core_type<tc>, window_params = [{transform_indices = @transform_0, window_bounds = array<i64: 128, 64>}, {pipeline_mode = #tpu.pipeline_mode<synchronous>, transform_indices = @transform_1, window_bounds = array<i64: 64, 32>}, {pipeline_mode = #tpu.pipeline_mode<synchronous>, transform_indices = @transform_2, window_bounds = array<i64: 1, 32>}, {pipeline_mode = #tpu.pipeline_mode<synchronous>, transform_indices = @transform_3, window_bounds = array<i64: 32, 16>}, {pipeline_mode = #tpu.pipeline_mode<synchronous>, transform_indices = @transform_4, window_bounds = array<i64: 1, 16>}, {pipeline_mode = #tpu.pipeline_mode<synchronous>, transform_indices = @transform_5, window_bounds = array<i64: 16, 8>}, {pipeline_mode = #tpu.pipeline_mode<synchronous>, transform_indices = @transform_6, window_bounds = array<i64: 1, 8>}, {transform_indices = @transform_7, window_bounds = array<i64: 128, 8>}]} {
    %c0 = arith.constant 0 : index
    %c0_0 = arith.constant 0 : index
    %0 = vector.load %arg1[%c0, %c0_0] : memref<128x64xf32, #tpu.memory_space<vmem>>, vector<128x64xf32>
    %1 = arith.truncf %0 : vector<128x64xf32> to vector<128x64xbf16>
    %c0_1 = arith.constant 0 : index
    %c0_2 = arith.constant 0 : index
    %2 = vector.load %arg2[%c0_1, %c0_2] : memref<64x32xbf16, #tpu.memory_space<vmem>>, vector<64x32xbf16>
    %cst = arith.constant dense<0.000000e+00> : vector<128x32xf32>
    %3 = tpu.matmul %1, %2, %cst {dimension_numbers = #tpu.dot_dimension_numbers<[1], [0], [0], [1], [0, 0, 1, 1], [], []>} : vector<128x64xbf16>, vector<64x32xbf16>, vector<128x32xf32> -> vector<128x32xf32>
    %c0_3 = arith.constant 0 : index
    %c0_4 = arith.constant 0 : index
    %4 = vector.load %arg3[%c0_3, %c0_4] : memref<1x32xf32, #tpu.memory_space<vmem>>, vector<1x32xf32>
    %5 = vector.broadcast %4 : vector<1x32xf32> to vector<128x32xf32>
    %6 = arith.addf %3, %5 : vector<128x32xf32>
    %cst_5 = arith.constant 0.000000e+00 : f32
    %7 = vector.broadcast %cst_5 : f32 to vector<128x32xf32>
    %8 = arith.maximumf %6, %7 : vector<128x32xf32>
    %9 = arith.truncf %8 : vector<128x32xf32> to vector<128x32xbf16>
    %c0_6 = arith.constant 0 : index
    %c0_7 = arith.constant 0 : index
    %10 = vector.load %arg4[%c0_6, %c0_7] : memref<32x16xbf16, #tpu.memory_space<vmem>>, vector<32x16xbf16>
    %cst_8 = arith.constant dense<0.000000e+00> : vector<128x16xf32>
    %11 = tpu.matmul %9, %10, %cst_8 {dimension_numbers = #tpu.dot_dimension_numbers<[1], [0], [0], [1], [0, 0, 1, 1], [], []>} : vector<128x32xbf16>, vector<32x16xbf16>, vector<128x16xf32> -> vector<128x16xf32>
    %c0_9 = arith.constant 0 : index
    %c0_10 = arith.constant 0 : index
    %12 = vector.load %arg5[%c0_9, %c0_10] : memref<1x16xf32, #tpu.memory_space<vmem>>, vector<1x16xf32>
    %13 = vector.broadcast %12 : vector<1x16xf32> to vector<128x16xf32>
    %14 = arith.addf %11, %13 : vector<128x16xf32>
    %cst_11 = arith.constant 0.000000e+00 : f32
    %15 = vector.broadcast %cst_11 : f32 to vector<128x16xf32>
    %16 = arith.maximumf %14, %15 : vector<128x16xf32>
    %17 = arith.truncf %16 : vector<128x16xf32> to vector<128x16xbf16>
    %c0_12 = arith.constant 0 : index
    %c0_13 = arith.constant 0 : index
    %18 = vector.load %arg6[%c0_12, %c0_13] : memref<16x8xbf16, #tpu.memory_space<vmem>>, vector<16x8xbf16>
    %cst_14 = arith.constant dense<0.000000e+00> : vector<128x8xf32>
    %19 = tpu.matmul %17, %18, %cst_14 {dimension_numbers = #tpu.dot_dimension_numbers<[1], [0], [0], [1], [0, 0, 1, 1], [], []>} : vector<128x16xbf16>, vector<16x8xbf16>, vector<128x8xf32> -> vector<128x8xf32>
    %c0_15 = arith.constant 0 : index
    %c0_16 = arith.constant 0 : index
    %20 = vector.load %arg7[%c0_15, %c0_16] : memref<1x8xf32, #tpu.memory_space<vmem>>, vector<1x8xf32>
    %21 = vector.broadcast %20 : vector<1x8xf32> to vector<128x8xf32>
    %22 = arith.addf %19, %21 : vector<128x8xf32>
    %c0_17 = arith.constant 0 : index
    %c0_18 = arith.constant 0 : index
    %23 = vector.load %arg8[%c0_17, %c0_18] : memref<128x8xf32, #tpu.memory_space<vmem>>, vector<128x8xf32>
    tpu.vector_store %arg8[%c0_17, %c0_18], %22 {strides = array<i32>} : memref<128x8xf32, #tpu.memory_space<vmem>>, vector<128x8xf32>,
    return
  }
  func.func @transform_0(%arg0: i32) -> (i32, i32) {
    %c0_i32 = arith.constant 0 : i32
    %c0_i32_0 = arith.constant 0 : i32
    return %arg0, %c0_i32 : i32, i32
  }
  func.func @transform_1(%arg0: i32) -> (i32, i32) {
    %c0_i32 = arith.constant 0 : i32
    %c0_i32_0 = arith.constant 0 : i32
    %c0_i32_1 = arith.constant 0 : i32
    return %c0_i32, %c0_i32_0 : i32, i32
  }
  func.func @transform_2(%arg0: i32) -> (i32, i32) {
    %c0_i32 = arith.constant 0 : i32
    %c0_i32_0 = arith.constant 0 : i32
    %c0_i32_1 = arith.constant 0 : i32
    return %c0_i32, %c0_i32_0 : i32, i32
  }
  func.func @transform_3(%arg0: i32) -> (i32, i32) {
    %c0_i32 = arith.constant 0 : i32
    %c0_i32_0 = arith.constant 0 : i32
    %c0_i32_1 = arith.constant 0 : i32
    return %c0_i32, %c0_i32_0 : i32, i32
  }
  func.func @transform_4(%arg0: i32) -> (i32, i32) {
    %c0_i32 = arith.constant 0 : i32
    %c0_i32_0 = arith.constant 0 : i32
    %c0_i32_1 = arith.constant 0 : i32
    return %c0_i32, %c0_i32_0 : i32, i32
  }
  func.func @transform_5(%arg0: i32) -> (i32, i32) {
    %c0_i32 = arith.constant 0 : i32
    %c0_i32_0 = arith.constant 0 : i32
    %c0_i32_1 = arith.constant 0 : i32
    return %c0_i32, %c0_i32_0 : i32, i32
  }
  func.func @transform_6(%arg0: i32) -> (i32, i32) {
    %c0_i32 = arith.constant 0 : i32
    %c0_i32_0 = arith.constant 0 : i32
    %c0_i32_1 = arith.constant 0 : i32
    return %c0_i32, %c0_i32_0 : i32, i32
  }
  func.func @transform_7(%arg0: i32) -> (i32, i32) {
    %c0_i32 = arith.constant 0 : i32
    %c0_i32_0 = arith.constant 0 : i32
    return %arg0, %c0_i32 : i32, i32
  }
}

</mosaic_0001>

<llo_original>
// kernel: tpu_custom_call.1
$region0: #{tpu_custom_call.1}
  #allocation0 [shape = 'u32[]', space=smem, size = 0x4, offset = 0x4, fixed_abs, tag = 'smem constant byte address 0x4 - core index']
  #allocation1 [shape = 'u32[144,128]{1,0:T(1,128)}', space=vmem, size = 0x12000, scoped, tag = 'internal scratch']
  %s0 = inlined_call_operand.vmem [shape: f32[256,64], index: 0, kind: input, shape index: {}]
  %s1 = inlined_call_operand.vmem [shape: bf16[64,32], index: 1, kind: input, shape index: {}]
  %s2 = inlined_call_operand.vmem [shape: f32[1,32], index: 2, kind: input, shape index: {}]
  %s3 = inlined_call_operand.vmem [shape: bf16[32,16], index: 3, kind: input, shape index: {}]
  %s4 = inlined_call_operand.vmem [shape: f32[1,16], index: 4, kind: input, shape index: {}]
  %s5 = inlined_call_operand.vmem [shape: bf16[16,8], index: 5, kind: input, shape index: {}]
  %s6 = inlined_call_operand.vmem [shape: f32[1,8], index: 6, kind: input, shape index: {}]
  %s7 = inlined_call_operand.vmem [shape: f32[256,8], index: 7, kind: output, shape index: {}]
  %s8 = sld [smem:[#allocation0]]
  $region61: #{tpu_custom_call.1} parent=0
    _
  %s10 = ssub.s32 1, %s8
  %s11 = scalar_select 0, %s10, %s8
  loop: start=0, step=1, limit=4
  $region2: #{tpu_custom_call.1} parent=0 // loop_pre_header
    _
  $region3: #{tpu_custom_call.1} parent=0 // loop_header
    %s13 = sphi 0, %s17
    %p14 = scmp.ge.s32.totalorder %s13, 4
    %s23 = sphi 0, %s25
    %s26 = sphi 0, %s23
    %s27 = sphi 0, %s26
    %s43 = sphi 0, %s27
    %s47 = sphi 0, %s47
    %s49 = sphi 0, %s47
    %s50 = sphi 0, %s49
    %s64 = sphi 0, %s50
    %s68 = sphi 0, %s68
    %s70 = sphi 0, %s68
    %s71 = sphi 0, %s70
    %s85 = sphi 0, %s71
    %s89 = sphi 0, %s89
    %s91 = sphi 0, %s89
    %s92 = sphi 0, %s91
    %s106 = sphi 0, %s92
    %s110 = sphi 0, %s110
    %s112 = sphi 0, %s110
    %s113 = sphi 0, %s112
    %s127 = sphi 0, %s113
    %s131 = sphi 0, %s131
    %s133 = sphi 0, %s131
    %s134 = sphi 0, %s133
    %s148 = sphi 0, %s134
    %s152 = sphi 0, %s152
    %s154 = sphi 0, %s152
    %s155 = sphi 0, %s154
    %s169 = sphi 0, %s155
    %s175 = sphi 0, %s177
    %s178 = sphi 0, %s175
    %s179 = sphi 0, %s178
    %s195 = sphi 0, %s179
  $region4: #{tpu_custom_call.1} parent=0 // loop_header_branch
    %16 = sbr.rel (%p14) target = $region8
  $region5: #{tpu_custom_call.1} parent=0 // loop_body
    %s18 = ssub.s32 %s13, 1
    %s19 = ssub.s32 %s13, 2
    %s20 = sadd.s32 %s13, 1
    %s21 = ssub.s32 %s13, %s20
    %p22 = scmp.eq.s32.totalorder %s21, 0
    %s24 = sadd.s32 %s23, 1
    %s25 = scalar_select %p22, %s23, %s24
    %p28 = pneg %p22
    %p29 = scmp.eq.s32.totalorder %s13, 1
    %p30 = por %p28, %p29
    %p31 = scmp.ne.s32.totalorder %s23, %s26
    %p32 = scmp.eq.s32.totalorder %s13, 0
    %p33 = por %p31, %p32
    %p34 = scmp.ne.s32.totalorder %s23, %s26
    %p35 = scmp.eq.s32.totalorder %s18, 1
    %p36 = por %p34, %p35
    %p37 = scmp.ne.s32.totalorder %s26, %s27
    %p38 = scmp.eq.s32.totalorder %s18, 0
    %p39 = por %p37, %p38
    %p40 = scmp.ne.s32.totalorder %s26, %s27
    %p41 = scmp.eq.s32.totalorder %s19, 1
    %p42 = por %p40, %p41
    %p44 = scmp.ne.s32.totalorder %s27, %s43
    %p45 = scmp.eq.s32.totalorder %s19, 0
    %p46 = por %p44, %p45
    %s48 = sadd.s32 %s47, 1
    %p51 = scmp.eq.s32.totalorder %s13, 1
    %p52 = scmp.ne.s32.totalorder %s47, %s49
    %p53 = scmp.eq.s32.totalorder %s13, 0
    %p54 = por %p52, %p53
    %p55 = scmp.ne.s32.totalorder %s47, %s49
    %p56 = scmp.eq.s32.totalorder %s18, 1
    %p57 = por %p55, %p56
    %p58 = scmp.ne.s32.totalorder %s49, %s50
    %p59 = scmp.eq.s32.totalorder %s18, 0
    %p60 = por %p58, %p59
    %p61 = scmp.ne.s32.totalorder %s49, %s50
    %p62 = scmp.eq.s32.totalorder %s19, 1
    %p63 = por %p61, %p62
    %p65 = scmp.ne.s32.totalorder %s50, %s64
    %p66 = scmp.eq.s32.totalorder %s19, 0
    %p67 = por %p65, %p66
    %s69 = sadd.s32 %s68, 1
    %p72 = scmp.eq.s32.totalorder %s13, 1
    %p73 = scmp.ne.s32.totalorder %s68, %s70
    %p74 = scmp.eq.s32.totalorder %s13, 0
    %p75 = por %p73, %p74
    %p76 = scmp.ne.s32.totalorder %s68, %s70
    %p77 = scmp.eq.s32.totalorder %s18, 1
    %p78 = por %p76, %p77
    %p79 = scmp.ne.s32.totalorder %s70, %s71
    %p80 = scmp.eq.s32.totalorder %s18, 0
    %p81 = por %p79, %p80
    %p82 = scmp.ne.s32.totalorder %s70, %s71
    %p83 = scmp.eq.s32.totalorder %s19, 1
    %p84 = por %p82, %p83
    %p86 = scmp.ne.s32.totalorder %s71, %s85
    %p87 = scmp.eq.s32.totalorder %s19, 0
    %p88 = por %p86, %p87
    %s90 = sadd.s32 %s89, 1
    %p93 = scmp.eq.s32.totalorder %s13, 1
    %p94 = scmp.ne.s32.totalorder %s89, %s91
    %p95 = scmp.eq.s32.totalorder %s13, 0
    %p96 = por %p94, %p95
    %p97 = scmp.ne.s32.totalorder %s89, %s91
    %p98 = scmp.eq.s32.totalorder %s18, 1
    %p99 = por %p97, %p98
    %p100 = scmp.ne.s32.totalorder %s91, %s92
    %p101 = scmp.eq.s32.totalorder %s18, 0
    %p102 = por %p100, %p101
    %p103 = scmp.ne.s32.totalorder %s91, %s92
    %p104 = scmp.eq.s32.totalorder %s19, 1
    %p105 = por %p103, %p104
    %p107 = scmp.ne.s32.totalorder %s92, %s106
    %p108 = scmp.eq.s32.totalorder %s19, 0
    %p109 = por %p107, %p108
    %s111 = sadd.s32 %s110, 1
    %p114 = scmp.eq.s32.totalorder %s13, 1
    %p115 = scmp.ne.s32.totalorder %s110, %s112
    %p116 = scmp.eq.s32.totalorder %s13, 0
    %p117 = por %p115, %p116
    %p118 = scmp.ne.s32.totalorder %s110, %s112
    %p119 = scmp.eq.s32.totalorder %s18, 1
    %p120 = por %p118, %p119
    %p121 = scmp.ne.s32.totalorder %s112, %s113
    %p122 = scmp.eq.s32.totalorder %s18, 0
    %p123 = por %p121, %p122
    %p124 = scmp.ne.s32.totalorder %s112, %s113
    %p125 = scmp.eq.s32.totalorder %s19, 1
    %p126 = por %p124, %p125
    %p128 = scmp.ne.s32.totalorder %s113, %s127
    %p129 = scmp.eq.s32.totalorder %s19, 0
    %p130 = por %p128, %p129
    %s132 = sadd.s32 %s131, 1
    %p135 = scmp.eq.s32.totalorder %s13, 1
    %p136 = scmp.ne.s32.totalorder %s131, %s133
    %p137 = scmp.eq.s32.totalorder %s13, 0
    %p138 = por %p136, %p137
    %p139 = scmp.ne.s32.totalorder %s131, %s133
    %p140 = scmp.eq.s32.totalorder %s18, 1
    %p141 = por %p139, %p140
    %p142 = scmp.ne.s32.totalorder %s133, %s134
    %p143 = scmp.eq.s32.totalorder %s18, 0
    %p144 = por %p142, %p143
    %p145 = scmp.ne.s32.totalorder %s133, %s134
    %p146 = scmp.eq.s32.totalorder %s19, 1
    %p147 = por %p145, %p146
    %p149 = scmp.ne.s32.totalorder %s134, %s148
    %p150 = scmp.eq.s32.totalorder %s19, 0
    %p151 = por %p149, %p150
    %s153 = sadd.s32 %s152, 1
    %p156 = scmp.eq.s32.totalorder %s13, 1
    %p157 = scmp.ne.s32.totalorder %s152, %s154
    %p158 = scmp.eq.s32.totalorder %s13, 0
    %p159 = por %p157, %p158
    %p160 = scmp.ne.s32.totalorder %s152, %s154
    %p161 = scmp.eq.s32.totalorder %s18, 1
    %p162 = por %p160, %p161
    %p163 = scmp.ne.s32.totalorder %s154, %s155
    %p164 = scmp.eq.s32.totalorder %s18, 0
    %p165 = por %p163, %p164
    %p166 = scmp.ne.s32.totalorder %s154, %s155
    %p167 = scmp.eq.s32.totalorder %s19, 1
    %p168 = por %p166, %p167
    %p170 = scmp.ne.s32.totalorder %s155, %s169
    %p171 = scmp.eq.s32.totalorder %s19, 0
    %p172 = por %p170, %p171
    %s173 = ssub.s32 %s13, %s20
    %p174 = scmp.eq.s32.totalorder %s173, 0
    %s176 = sadd.s32 %s175, 1
    %s177 = scalar_select %p174, %s175, %s176
    %p180 = pneg %p174
    %p181 = scmp.eq.s32.totalorder %s13, 1
    %p182 = por %p180, %p181
    %p183 = scmp.ne.s32.totalorder %s175, %s178
    %p184 = scmp.eq.s32.totalorder %s13, 0
    %p185 = por %p183, %p184
    %p186 = scmp.ne.s32.totalorder %s175, %s178
    %p187 = scmp.eq.s32.totalorder %s18, 1
    %p188 = por %p186, %p187
    %p189 = scmp.ne.s32.totalorder %s178, %s179
    %p190 = scmp.eq.s32.totalorder %s18, 0
    %p191 = por %p189, %p190
    %p192 = scmp.ne.s32.totalorder %s178, %s179
    %p193 = scmp.eq.s32.totalorder %s19, 1
    %p194 = por %p192, %p193
    %p196 = scmp.ne.s32.totalorder %s179, %s195
    %p197 = scmp.eq.s32.totalorder %s19, 0
    %p198 = por %p196, %p197
    %p199 = scmp.le.s32.totalorder 1, %s13
    %p200 = scmp.lt.s32.totalorder %s13, 3
    %p201 = pnand %p199, %p200
    %p202 = pneg %p201
    // Predicated region
    $region9: #{tpu_custom_call.1} parent=5 // pred_check
      _
    $region10: #{tpu_custom_call.1} parent=5 // pred_check_branch
      %204 = sbr.rel (%p201) target = $region12
    $region11: #{tpu_custom_call.1} parent=5 // pred_region
      %s205 = ssub.s32 %s13, 1
      // Predicated region
      $region13: #{tpu_custom_call.1} parent=11 // pred_check
        %p206 = pneg %p60
      $region14: #{tpu_custom_call.1} parent=11 // pred_check_branch
        %208 = sbr.rel (%p206) target = $region16
      $region15: #{tpu_custom_call.1} parent=11 // pred_region
        _
      $region16: #{tpu_custom_call.1} parent=11 // pred_fallthru
        _
      // Predicated region
      $region17: #{tpu_custom_call.1} parent=11 // pred_check
        %p209 = pneg %p81
      $region18: #{tpu_custom_call.1} parent=11 // pred_check_branch
        %211 = sbr.rel (%p209) target = $region20
      $region19: #{tpu_custom_call.1} parent=11 // pred_region
        _
      $region20: #{tpu_custom_call.1} parent=11 // pred_fallthru
        _
      // Predicated region
      $region21: #{tpu_custom_call.1} parent=11 // pred_check
        %p212 = pneg %p102
      $region22: #{tpu_custom_call.1} parent=11 // pred_check_branch
        %214 = sbr.rel (%p212) target = $region24
      $region23: #{tpu_custom_call.1} parent=11 // pred_region
        _
      $region24: #{tpu_custom_call.1} parent=11 // pred_fallthru
        _
      // Predicated region
      $region25: #{tpu_custom_call.1} parent=11 // pred_check
        %p215 = pneg %p123
      $region26: #{tpu_custom_call.1} parent=11 // pred_check_branch
        %217 = sbr.rel (%p215) target = $region28
      $region27: #{tpu_custom_call.1} parent=11 // pred_region
        _
      $region28: #{tpu_custom_call.1} parent=11 // pred_fallthru
        _
      // Predicated region
      $region29: #{tpu_custom_call.1} parent=11 // pred_check
        %p218 = pneg %p144
      $region30: #{tpu_custom_call.1} parent=11 // pred_check_branch
        %220 = sbr.rel (%p218) target = $region32
      $region31: #{tpu_custom_call.1} parent=11 // pred_region
        _
      $region32: #{tpu_custom_call.1} parent=11 // pred_fallthru
        _
      // Predicated region
      $region33: #{tpu_custom_call.1} parent=11 // pred_check
        %p221 = pneg %p165
      $region34: #{tpu_custom_call.1} parent=11 // pred_check_branch
        %223 = sbr.rel (%p221) target = $region36
      $region35: #{tpu_custom_call.1} parent=11 // pred_region
        _
      $region36: #{tpu_custom_call.1} parent=11 // pred_fallthru
        _
    $region12: #{tpu_custom_call.1} parent=5 // pred_fallthru
      _
    %p224 = scmp.lt.s32.totalorder %s13, 2
    // Predicated region
    $region37: #{tpu_custom_call.1} parent=5 // pred_check
      %p225 = pneg %p224
    $region38: #{tpu_custom_call.1} parent=5 // pred_check_branch
      %227 = sbr.rel (%p225) target = $region40
    $region39: #{tpu_custom_call.1} parent=5 // pred_region
      // Predicated region
      $region41: #{tpu_custom_call.1} parent=39 // pred_check
        %p228 = pneg %p33
      $region42: #{tpu_custom_call.1} parent=39 // pred_check_branch
        %230 = sbr.rel (%p228) target = $region44
      $region43: #{tpu_custom_call.1} parent=39 // pred_region
        %s231 = smul.u32 16, %s13
        %p232 = scmp.lt.s32.totalorder %s231, 31
        %s233 = scalar_select %p232, %s231, 31
        %s234 = smul.addr %s233, 8
        %s235 = scalar_lea.vmem %s0, %s234
        %s236 = smul.u32 16, %s13
      $region44: #{tpu_custom_call.1} parent=39 // pred_fallthru
        _
    $region40: #{tpu_custom_call.1} parent=5 // pred_fallthru
      _
    %p237 = scmp.le.s32.totalorder 1, %s13
    %p238 = scmp.lt.s32.totalorder %s13, 3
    %p239 = pnand %p237, %p238
    %p240 = pneg %p239
    // Predicated region
    $region45: #{tpu_custom_call.1} parent=5 // pred_check
      _
    $region46: #{tpu_custom_call.1} parent=5 // pred_check_branch
      %242 = sbr.rel (%p239) target = $region48
    $region47: #{tpu_custom_call.1} parent=5 // pred_region
      %s243 = ssub.s32 %s13, 1
      %s244 = smul.u32 16, %s18
      %p245 = scmp.lt.s32.totalorder %s244, 31
      %s246 = scalar_select %p245, %s244, 31
      %s247 = smul.addr %s246, 8
      %s248 = scalar_lea.vmem %s0, %s247
      %p249 = pneg %p39
      %p250 = pneg %p36
      %p251 = pneg %p60
      %p252 = pneg %p57
      %p253 = pneg %p81
      %p254 = pneg %p78
      %p255 = pneg %p102
      %p256 = pneg %p99
      %p257 = pneg %p123
      %p258 = pneg %p120
      %p259 = pneg %p144
      %p260 = pneg %p141
      %p261 = pneg %p165
      %p262 = pneg %p162
      %p263 = pneg %p191
      %p264 = pneg %p188
      %s265 = smul.u32 16, %s18
      %p266 = scmp.lt.s32.totalorder %s265, 31
      %s267 = scalar_select %p266, %s265, 31
      %s268 = smul.addr %s267, 8
      %s269 = scalar_lea.vmem %s7, %s268
      %s270 = smul.u32 16, %s18
      %p271 = scmp.lt.s32.totalorder %s270, 31
      %s272 = scalar_select %p271, %s270, 31
      %s273 = smul.addr %s272, 8
      %s274 = scalar_lea.vmem %s0, %s273
      %s275 = smul.u32 16, %s18
      %s276 = smul.u32 16, %s18
      %p277 = scmp.lt.s32.totalorder %s276, 31
      %s278 = scalar_select %p277, %s276, 31
      %s279 = smul.addr %s278, 8
      %s280 = scalar_lea.vmem %s7, %s279
      %s281 = smul.u32 16, %s18
      %v283 = vld [vmem:[%s274] sm:$0xff]
      %v284 = vld [vmem:[%s274 + $0x8] sm:$0xff]
      %v285 = vld [vmem:[%s274 + $0x10] sm:$0xff]
      %v286 = vld [vmem:[%s274 + $0x18] sm:$0xff]
      %v287 = vld [vmem:[%s274 + $0x20] sm:$0xff]
      %v288 = vld [vmem:[%s274 + $0x28] sm:$0xff]
      %v289 = vld [vmem:[%s274 + $0x30] sm:$0xff]
      %v290 = vld [vmem:[%s274 + $0x38] sm:$0xff]
      %v291 = vld [vmem:[%s274 + $0x40] sm:$0xff]
      %v292 = vld [vmem:[%s274 + $0x48] sm:$0xff]
      %v293 = vld [vmem:[%s274 + $0x50] sm:$0xff]
      %v294 = vld [vmem:[%s274 + $0x58] sm:$0xff]
      %v295 = vld [vmem:[%s274 + $0x60] sm:$0xff]
      %v296 = vld [vmem:[%s274 + $0x68] sm:$0xff]
      %v297 = vld [vmem:[%s274 + $0x70] sm:$0xff]
      %v298 = vld [vmem:[%s274 + $0x78] sm:$0xff]
      %v299 = vpack.c.bf16 %v284, %v283
      %v300 = vpack.c.bf16 %v286, %v285
      %v301 = vpack.c.bf16 %v288, %v287
      %v302 = vpack.c.bf16 %v290, %v289
      %v303 = vpack.c.bf16 %v292, %v291
      %v304 = vpack.c.bf16 %v294, %v293
      %v305 = vpack.c.bf16 %v296, %v295
      %v306 = vpack.c.bf16 %v298, %v297
      %v307 = vld [vmem:[%s1] sm:$0xf]
      %v308 = vld [vmem:[%s1 + $0x4] sm:$0xf]
      %v309 = vld [vmem:[%s1 + $0x8] sm:$0xf]
      %v310 = vld [vmem:[%s1 + $0xc] sm:$0xf]
      %v311 = vld [vmem:[%s1 + $0x10] sm:$0xf]
      %v312 = vld [vmem:[%s1 + $0x14] sm:$0xf]
      %v313 = vld [vmem:[%s1 + $0x18] sm:$0xf]
      %v314 = vld [vmem:[%s1 + $0x1c] sm:$0xf]
      %v315 = vld [vmem:[%s2] sm:$0x1]
      %v317 = vlaneseq
      %v318 = vshrl.u32 %v317, 7
      %v319 = vsub.s32 0, %v318
      %v320 = vrot.slane %v315, %v319
      %v330 = vunpack.c.l.b16 %v307
      %v331 = vunpack.c.l.b16 %v308
      %v332 = vunpack.c.l.b16 %v309
      %v333 = vunpack.c.l.b16 %v310
      %v334 = vunpack.c.l.b16 %v311
      %v335 = vunpack.c.l.b16 %v312
      %v336 = vunpack.c.l.b16 %v313
      %v337 = vunpack.c.l.b16 %v314
      %v338 = vpack.c.b16 %v331, %v330
      %v339 = vpack.c.b16 %v333, %v332
      %v340 = vpack.c.b16 %v335, %v334
      %v341 = vpack.c.b16 %v337, %v336
      %vm346 = vcmask 523264
      %v348 = vsel %vm346, %v299, 0
      %v351 = vsel %vm346, %v300, 0
      %v354 = vsel %vm346, %v301, 0
      %v357 = vsel %vm346, %v302, 0
      %v360 = vsel %vm346, %v303, 0
      %v363 = vsel %vm346, %v304, 0
      %v366 = vsel %vm346, %v305, 0
      %v369 = vsel %vm346, %v306, 0
      %371 = vmatprep.subr.bf16.mxu0 0
      %372 = vmatpush1.bf16.msra.mxu0 %v338
      %373 = vmatprep.subr.bf16.mxu0 0
      %374 = vmatpush1.bf16.msra.mxu0 %v339
      %375 = vmatprep.subr.bf16.mxu0 0
      %376 = vmatpush1.bf16.msra.mxu0 %v340
      %377 = vmatprep.subr.bf16.mxu0 0
      %378 = vmatpush1.bf16.msra.mxu0 %v341
      %379 = vmatprep.subr.bf16.mxu0 0
      %380 = vmatpush1.bf16.msra.mxu0 0
      %381 = vmatprep.subr.bf16.mxu0 0
      %382 = vmatpush1.bf16.msra.mxu0 0
      %383 = vmatprep.subr.bf16.mxu0 0
      %384 = vmatpush1.bf16.msra.mxu0 0
      %385 = vmatprep.subr.bf16.mxu0 0
      %386 = vmatpush1.bf16.msra.mxu0 0
      %387 = vmatprep.subr.bf16.mxu0 0
      %388 = vmatpush1.bf16.msra.mxu0 0
      %389 = vmatprep.subr.bf16.mxu0 0
      %390 = vmatpush1.bf16.msra.mxu0 0
      %391 = vmatprep.subr.bf16.mxu0 0
      %392 = vmatpush1.bf16.msra.mxu0 0
      %393 = vmatprep.subr.bf16.mxu0 0
      %394 = vmatpush1.bf16.msra.mxu0 0
      %395 = vmatprep.subr.bf16.mxu0 0
      %396 = vmatpush1.bf16.msra.mxu0 0
      %397 = vmatprep.subr.bf16.mxu0 0
      %398 = vmatpush1.bf16.msra.mxu0 0
      %399 = vmatprep.subr.bf16.mxu0 0
      %400 = vmatpush1.bf16.msra.mxu0 0
      %401 = vmatprep.subr.bf16.mxu0 0
      %402 = vmatpush1.bf16.msra.mxu0 0
      %403 = vmatprep.mubr.bf16.mxu0 0
      %404 = vmatmul.mubr.bf16.gmra.mrb[0].mxu0 %v348
      %v405 = vpop.f32.mrb[0].mxu0
      %v406 = vadd.f32 %v320, %v405
      %v407 = vpop.f32.mrb[0].mxu0
      %v408 = vpop.f32.mrb[0].mxu0
      %v409 = vadd.f32 %v320, %v408
      %v410 = vpop.f32.mrb[0].mxu0
      %411 = vmatprep.mubr.bf16.mxu0 0
      %412 = vmatmul.mubr.bf16.gmra.mrb[0].mxu0 %v351
      %v413 = vpop.f32.mrb[0].mxu0
      %v414 = vadd.f32 %v320, %v413
      %v415 = vpop.f32.mrb[0].mxu0
      %v416 = vpop.f32.mrb[0].mxu0
      %v417 = vadd.f32 %v320, %v416
      %v418 = vpop.f32.mrb[0].mxu0
      %419 = vmatprep.mubr.bf16.mxu0 0
      %420 = vmatmul.mubr.bf16.gmra.mrb[0].mxu0 %v354
      %v421 = vpop.f32.mrb[0].mxu0
      %v422 = vadd.f32 %v320, %v421
      %v423 = vpop.f32.mrb[0].mxu0
      %v424 = vpop.f32.mrb[0].mxu0
      %v425 = vadd.f32 %v320, %v424
      %v426 = vpop.f32.mrb[0].mxu0
      %427 = vmatprep.mubr.bf16.mxu0 0
      %428 = vmatmul.mubr.bf16.gmra.mrb[0].mxu0 %v357
      %v429 = vpop.f32.mrb[0].mxu0
      %v430 = vadd.f32 %v320, %v429
      %v431 = vpop.f32.mrb[0].mxu0
      %v432 = vpop.f32.mrb[0].mxu0
      %v433 = vadd.f32 %v320, %v432
      %v434 = vpop.f32.mrb[0].mxu0
      %435 = vmatprep.mubr.bf16.mxu0 0
      %436 = vmatmul.mubr.bf16.gmra.mrb[0].mxu0 %v360
      %v437 = vpop.f32.mrb[0].mxu0
      %v438 = vadd.f32 %v320, %v437
      %v439 = vpop.f32.mrb[0].mxu0
      %v440 = vpop.f32.mrb[0].mxu0
      %v441 = vadd.f32 %v320, %v440
      %v442 = vpop.f32.mrb[0].mxu0
      %443 = vmatprep.mubr.bf16.mxu0 0
      %444 = vmatmul.mubr.bf16.gmra.mrb[0].mxu0 %v363
      %v445 = vpop.f32.mrb[0].mxu0
      %v446 = vadd.f32 %v320, %v445
      %v447 = vpop.f32.mrb[0].mxu0
      %v448 = vpop.f32.mrb[0].mxu0
      %v449 = vadd.f32 %v320, %v448
      %v450 = vpop.f32.mrb[0].mxu0
      %451 = vmatprep.mubr.bf16.mxu0 0
      %452 = vmatmul.mubr.bf16.gmra.mrb[0].mxu0 %v366
      %v453 = vpop.f32.mrb[0].mxu0
      %v454 = vadd.f32 %v320, %v453
      %v455 = vpop.f32.mrb[0].mxu0
      %v456 = vpop.f32.mrb[0].mxu0
      %v457 = vadd.f32 %v320, %v456
      %v458 = vpop.f32.mrb[0].mxu0
      %459 = vmatprep.mubr.bf16.mxu0 0
      %460 = vmatmul.mubr.bf16.gmra.mrb[0].mxu0 %v369
      %v461 = vpop.f32.mrb[0].mxu0
      %v462 = vadd.f32 %v320, %v461
      %v463 = vpop.f32.mrb[0].mxu0
      %v464 = vpop.f32.mrb[0].mxu0
      %v465 = vadd.f32 %v320, %v464
      %v466 = vpop.f32.mrb[0].mxu0
      %467 = vdwg.mxu0
      %v468 = vmax.f32 %v406, 0.0
      %v469 = vmax.f32 %v409, 0.0
      %v470 = vmax.f32 %v414, 0.0
      %v471 = vmax.f32 %v417, 0.0
      %v472 = vmax.f32 %v422, 0.0
      %v473 = vmax.f32 %v425, 0.0
      %v474 = vmax.f32 %v430, 0.0
      %v475 = vmax.f32 %v433, 0.0
      %v476 = vmax.f32 %v438, 0.0
      %v477 = vmax.f32 %v441, 0.0
      %v478 = vmax.f32 %v446, 0.0
      %v479 = vmax.f32 %v449, 0.0
      %v480 = vmax.f32 %v454, 0.0
      %v481 = vmax.f32 %v457, 0.0
      %v482 = vmax.f32 %v462, 0.0
      %v483 = vmax.f32 %v465, 0.0
      %v484 = vpack.c.bf16 %v469, %v468
      %v485 = vpack.c.bf16 %v471, %v470
      %v486 = vpack.c.bf16 %v473, %v472
      %v487 = vpack.c.bf16 %v475, %v474
      %v488 = vpack.c.bf16 %v477, %v476
      %v489 = vpack.c.bf16 %v479, %v478
      %v490 = vpack.c.bf16 %v481, %v480
      %v491 = vpack.c.bf16 %v483, %v482
      %v492 = vld [vmem:[%s3] sm:$0xf]
      %v493 = vld [vmem:[%s3 + $0x4] sm:$0xf]
      %v494 = vld [vmem:[%s3 + $0x8] sm:$0xf]
      %v495 = vld [vmem:[%s3 + $0xc] sm:$0xf]
      %v496 = vld [vmem:[%s4] sm:$0x1]
      %v498 = vlaneseq
      %v499 = vshrl.u32 %v498, 7
      %v500 = vsub.s32 0, %v499
      %v501 = vrot.slane %v496, %v500
      %v507 = vunpack.c.l.b16 %v492
      %v508 = vunpack.c.l.b16 %v493
      %v509 = vunpack.c.l.b16 %v494
      %v510 = vunpack.c.l.b16 %v495
      %v511 = vpack.c.b16 %v508, %v507
      %v512 = vpack.c.b16 %v510, %v509
      %vm515 = vcmask 261120
      %v517 = vsel %vm515, %v484, 0
      %v520 = vsel %vm515, %v485, 0
      %v523 = vsel %vm515, %v486, 0
      %v526 = vsel %vm515, %v487, 0
      %v529 = vsel %vm515, %v488, 0
      %v532 = vsel %vm515, %v489, 0
      %v535 = vsel %vm515, %v490, 0
      %v538 = vsel %vm515, %v491, 0
      %540 = vmatprep.subr.bf16.mxu0 0
      %541 = vmatpush1.bf16.msra.mxu0 %v511
      %542 = vmatprep.subr.bf16.mxu0 0
      %543 = vmatpush1.bf16.msra.mxu0 %v512
      %544 = vmatprep.subr.bf16.mxu0 0
      %545 = vmatpush1.bf16.msra.mxu0 0
      %546 = vmatprep.subr.bf16.mxu0 0
      %547 = vmatpush1.bf16.msra.mxu0 0
      %548 = vmatprep.subr.bf16.mxu0 0
      %549 = vmatpush1.bf16.msra.mxu0 0
      %550 = vmatprep.subr.bf16.mxu0 0
      %551 = vmatpush1.bf16.msra.mxu0 0
      %552 = vmatprep.subr.bf16.mxu0 0
      %553 = vmatpush1.bf16.msra.mxu0 0
      %554 = vmatprep.subr.bf16.mxu0 0
      %555 = vmatpush1.bf16.msra.mxu0 0
      %556 = vmatprep.subr.bf16.mxu0 0
      %557 = vmatpush1.bf16.msra.mxu0 0
      %558 = vmatprep.subr.bf16.mxu0 0
      %559 = vmatpush1.bf16.msra.mxu0 0
      %560 = vmatprep.subr.bf16.mxu0 0
      %561 = vmatpush1.bf16.msra.mxu0 0
      %562 = vmatprep.subr.bf16.mxu0 0
      %563 = vmatpush1.bf16.msra.mxu0 0
      %564 = vmatprep.subr.bf16.mxu0 0
      %565 = vmatpush1.bf16.msra.mxu0 0
      %566 = vmatprep.subr.bf16.mxu0 0
      %567 = vmatpush1.bf16.msra.mxu0 0
      %568 = vmatprep.subr.bf16.mxu0 0
      %569 = vmatpush1.bf16.msra.mxu0 0
      %570 = vmatprep.subr.bf16.mxu0 0
      %571 = vmatpush1.bf16.msra.mxu0 0
      %572 = vmatprep.mubr.bf16.mxu0 0
      %573 = vmatmul.mubr.bf16.gmra.mrb[0].mxu0 %v517
      %v574 = vpop.f32.mrb[0].mxu0
      %v575 = vadd.f32 %v501, %v574
      %v576 = vpop.f32.mrb[0].mxu0
      %v577 = vpop.f32.mrb[0].mxu0
      %v578 = vadd.f32 %v501, %v577
      %v579 = vpop.f32.mrb[0].mxu0
      %580 = vmatprep.mubr.bf16.mxu0 0
      %581 = vmatmul.mubr.bf16.gmra.mrb[0].mxu0 %v520
      %v582 = vpop.f32.mrb[0].mxu0
      %v583 = vadd.f32 %v501, %v582
      %v584 = vpop.f32.mrb[0].mxu0
      %v585 = vpop.f32.mrb[0].mxu0
      %v586 = vadd.f32 %v501, %v585
      %v587 = vpop.f32.mrb[0].mxu0
      %588 = vmatprep.mubr.bf16.mxu0 0
      %589 = vmatmul.mubr.bf16.gmra.mrb[0].mxu0 %v523
      %v590 = vpop.f32.mrb[0].mxu0
      %v591 = vadd.f32 %v501, %v590
      %v592 = vpop.f32.mrb[0].mxu0
      %v593 = vpop.f32.mrb[0].mxu0
      %v594 = vadd.f32 %v501, %v593
      %v595 = vpop.f32.mrb[0].mxu0
      %596 = vmatprep.mubr.bf16.mxu0 0
      %597 = vmatmul.mubr.bf16.gmra.mrb[0].mxu0 %v526
      %v598 = vpop.f32.mrb[0].mxu0
      %v599 = vadd.f32 %v501, %v598
      %v600 = vpop.f32.mrb[0].mxu0
      %v601 = vpop.f32.mrb[0].mxu0
      %v602 = vadd.f32 %v501, %v601
      %v603 = vpop.f32.mrb[0].mxu0
      %604 = vmatprep.mubr.bf16.mxu0 0
      %605 = vmatmul.mubr.bf16.gmra.mrb[0].mxu0 %v529
      %v606 = vpop.f32.mrb[0].mxu0
      %v607 = vadd.f32 %v501, %v606
      %v608 = vpop.f32.mrb[0].mxu0
      %v609 = vpop.f32.mrb[0].mxu0
      %v610 = vadd.f32 %v501, %v609
      %v611 = vpop.f32.mrb[0].mxu0
      %612 = vmatprep.mubr.bf16.mxu0 0
      %613 = vmatmul.mubr.bf16.gmra.mrb[0].mxu0 %v532
      %v614 = vpop.f32.mrb[0].mxu0
      %v615 = vadd.f32 %v501, %v614
      %v616 = vpop.f32.mrb[0].mxu0
      %v617 = vpop.f32.mrb[0].mxu0
      %v618 = vadd.f32 %v501, %v617
      %v619 = vpop.f32.mrb[0].mxu0
      %620 = vmatprep.mubr.bf16.mxu0 0
      %621 = vmatmul.mubr.bf16.gmra.mrb[0].mxu0 %v535
      %v622 = vpop.f32.mrb[0].mxu0
      %v623 = vadd.f32 %v501, %v622
      %v624 = vpop.f32.mrb[0].mxu0
      %v625 = vpop.f32.mrb[0].mxu0
      %v626 = vadd.f32 %v501, %v625
      %v627 = vpop.f32.mrb[0].mxu0
      %628 = vmatprep.mubr.bf16.mxu0 0
      %629 = vmatmul.mubr.bf16.gmra.mrb[0].mxu0 %v538
      %v630 = vpop.f32.mrb[0].mxu0
      %v631 = vadd.f32 %v501, %v630
      %v632 = vpop.f32.mrb[0].mxu0
      %v633 = vpop.f32.mrb[0].mxu0
      %v634 = vadd.f32 %v501, %v633
      %v635 = vpop.f32.mrb[0].mxu0
      %636 = vdwg.mxu0
      %v637 = vmax.f32 %v575, 0.0
      %v638 = vmax.f32 %v578, 0.0
      %v639 = vmax.f32 %v583, 0.0
      %v640 = vmax.f32 %v586, 0.0
      %v641 = vmax.f32 %v591, 0.0
      %v642 = vmax.f32 %v594, 0.0
      %v643 = vmax.f32 %v599, 0.0
      %v644 = vmax.f32 %v602, 0.0
      %v645 = vmax.f32 %v607, 0.0
      %v646 = vmax.f32 %v610, 0.0
      %v647 = vmax.f32 %v615, 0.0
      %v648 = vmax.f32 %v618, 0.0
      %v649 = vmax.f32 %v623, 0.0
      %v650 = vmax.f32 %v626, 0.0
      %v651 = vmax.f32 %v631, 0.0
      %v652 = vmax.f32 %v634, 0.0
      %v653 = vpack.c.bf16 %v638, %v637
      %v654 = vpack.c.bf16 %v640, %v639
      %v655 = vpack.c.bf16 %v642, %v641
      %v656 = vpack.c.bf16 %v644, %v643
      %v657 = vpack.c.bf16 %v646, %v645
      %v658 = vpack.c.bf16 %v648, %v647
      %v659 = vpack.c.bf16 %v650, %v649
      %v660 = vpack.c.bf16 %v652, %v651
      %v661 = vld [vmem:[%s5] sm:$0xf]
      %v662 = vld [vmem:[%s5 + $0x4] sm:$0xf]
      %v663 = vld [vmem:[%s6] sm:$0x1]
      %v665 = vlaneseq
      %v666 = vshrl.u32 %v665, 7
      %v667 = vsub.s32 0, %v666
      %v668 = vrot.slane %v663, %v667
      %v672 = vunpack.c.l.b16 %v661
      %v673 = vunpack.c.l.b16 %v662
      %v674 = vpack.c.b16 %v673, %v672
      %vm676 = vcmask 130048
      %v678 = vsel %vm676, %v653, 0
      %v681 = vsel %vm676, %v654, 0
      %v684 = vsel %vm676, %v655, 0
      %v687 = vsel %vm676, %v656, 0
      %v690 = vsel %vm676, %v657, 0
      %v693 = vsel %vm676, %v658, 0
      %v696 = vsel %vm676, %v659, 0
      %v699 = vsel %vm676, %v660, 0
      %701 = vmatprep.subr.bf16.mxu0 0
      %702 = vmatpush1.bf16.msra.mxu0 %v674
      %703 = vmatprep.subr.bf16.mxu0 0
      %704 = vmatpush1.bf16.msra.mxu0 0
      %705 = vmatprep.subr.bf16.mxu0 0
      %706 = vmatpush1.bf16.msra.mxu0 0
      %707 = vmatprep.subr.bf16.mxu0 0
      %708 = vmatpush1.bf16.msra.mxu0 0
      %709 = vmatprep.subr.bf16.mxu0 0
      %710 = vmatpush1.bf16.msra.mxu0 0
      %711 = vmatprep.subr.bf16.mxu0 0
      %712 = vmatpush1.bf16.msra.mxu0 0
      %713 = vmatprep.subr.bf16.mxu0 0
      %714 = vmatpush1.bf16.msra.mxu0 0
      %715 = vmatprep.subr.bf16.mxu0 0
      %716 = vmatpush1.bf16.msra.mxu0 0
      %717 = vmatprep.subr.bf16.mxu0 0
      %718 = vmatpush1.bf16.msra.mxu0 0
      %719 = vmatprep.subr.bf16.mxu0 0
      %720 = vmatpush1.bf16.msra.mxu0 0
      %721 = vmatprep.subr.bf16.mxu0 0
      %722 = vmatpush1.bf16.msra.mxu0 0
      %723 = vmatprep.subr.bf16.mxu0 0
      %724 = vmatpush1.bf16.msra.mxu0 0
      %725 = vmatprep.subr.bf16.mxu0 0
      %726 = vmatpush1.bf16.msra.mxu0 0
      %727 = vmatprep.subr.bf16.mxu0 0
      %728 = vmatpush1.bf16.msra.mxu0 0
      %729 = vmatprep.subr.bf16.mxu0 0
      %730 = vmatpush1.bf16.msra.mxu0 0
      %731 = vmatprep.subr.bf16.mxu0 0
      %732 = vmatpush1.bf16.msra.mxu0 0
      %733 = vmatprep.mubr.bf16.mxu0 0
      %734 = vmatmul.mubr.bf16.gmra.mrb[0].mxu0 %v678
      %v735 = vpop.f32.mrb[0].mxu0
      %v736 = vadd.f32 %v668, %v735
      %v737 = vpop.f32.mrb[0].mxu0
      %v738 = vpop.f32.mrb[0].mxu0
      %v739 = vadd.f32 %v668, %v738
      %v740 = vpop.f32.mrb[0].mxu0
      %741 = vmatprep.mubr.bf16.mxu0 0
      %742 = vmatmul.mubr.bf16.gmra.mrb[0].mxu0 %v681
      %v743 = vpop.f32.mrb[0].mxu0
      %v744 = vadd.f32 %v668, %v743
      %v745 = vpop.f32.mrb[0].mxu0
      %v746 = vpop.f32.mrb[0].mxu0
      %v747 = vadd.f32 %v668, %v746
      %v748 = vpop.f32.mrb[0].mxu0
      %749 = vmatprep.mubr.bf16.mxu0 0
      %750 = vmatmul.mubr.bf16.gmra.mrb[0].mxu0 %v684
      %v751 = vpop.f32.mrb[0].mxu0
      %v752 = vadd.f32 %v668, %v751
      %v753 = vpop.f32.mrb[0].mxu0
      %v754 = vpop.f32.mrb[0].mxu0
      %v755 = vadd.f32 %v668, %v754
      %v756 = vpop.f32.mrb[0].mxu0
      %757 = vmatprep.mubr.bf16.mxu0 0
      %758 = vmatmul.mubr.bf16.gmra.mrb[0].mxu0 %v687
      %v759 = vpop.f32.mrb[0].mxu0
      %v760 = vadd.f32 %v668, %v759
      %v761 = vpop.f32.mrb[0].mxu0
      %v762 = vpop.f32.mrb[0].mxu0
      %v763 = vadd.f32 %v668, %v762
      %v764 = vpop.f32.mrb[0].mxu0
      %765 = vmatprep.mubr.bf16.mxu0 0
      %766 = vmatmul.mubr.bf16.gmra.mrb[0].mxu0 %v690
      %v767 = vpop.f32.mrb[0].mxu0
      %v768 = vadd.f32 %v668, %v767
      %v769 = vpop.f32.mrb[0].mxu0
      %v770 = vpop.f32.mrb[0].mxu0
      %v771 = vadd.f32 %v668, %v770
      %v772 = vpop.f32.mrb[0].mxu0
      %773 = vmatprep.mubr.bf16.mxu0 0
      %774 = vmatmul.mubr.bf16.gmra.mrb[0].mxu0 %v693
      %v775 = vpop.f32.mrb[0].mxu0
      %v776 = vadd.f32 %v668, %v775
      %v777 = vpop.f32.mrb[0].mxu0
      %v778 = vpop.f32.mrb[0].mxu0
      %v779 = vadd.f32 %v668, %v778
      %v780 = vpop.f32.mrb[0].mxu0
      %781 = vmatprep.mubr.bf16.mxu0 0
      %782 = vmatmul.mubr.bf16.gmra.mrb[0].mxu0 %v696
      %v783 = vpop.f32.mrb[0].mxu0
      %v784 = vadd.f32 %v668, %v783
      %v785 = vpop.f32.mrb[0].mxu0
      %v786 = vpop.f32.mrb[0].mxu0
      %v787 = vadd.f32 %v668, %v786
      %v788 = vpop.f32.mrb[0].mxu0
      %789 = vmatprep.mubr.bf16.mxu0 0
      %790 = vmatmul.mubr.bf16.gmra.mrb[0].mxu0 %v699
      %v791 = vpop.f32.mrb[0].mxu0
      %v792 = vadd.f32 %v668, %v791
      %v793 = vpop.f32.mrb[0].mxu0
      %v794 = vpop.f32.mrb[0].mxu0
      %v795 = vadd.f32 %v668, %v794
      %v796 = vpop.f32.mrb[0].mxu0
      %797 = vdwg.mxu0
      %vm798 = vcmask 64512
      %799 = vst.msk [vmem:[%s280] sm:$0xff] %vm798, %v736
      %800 = vst.msk [vmem:[%s280 + $0x8] sm:$0xff] %vm798, %v739
      %801 = vst.msk [vmem:[%s280 + $0x10] sm:$0xff] %vm798, %v744
      %802 = vst.msk [vmem:[%s280 + $0x18] sm:$0xff] %vm798, %v747
      %803 = vst.msk [vmem:[%s280 + $0x20] sm:$0xff] %vm798, %v752
      %804 = vst.msk [vmem:[%s280 + $0x28] sm:$0xff] %vm798, %v755
      %805 = vst.msk [vmem:[%s280 + $0x30] sm:$0xff] %vm798, %v760
      %806 = vst.msk [vmem:[%s280 + $0x38] sm:$0xff] %vm798, %v763
      %807 = vst.msk [vmem:[%s280 + $0x40] sm:$0xff] %vm798, %v768
      %808 = vst.msk [vmem:[%s280 + $0x48] sm:$0xff] %vm798, %v771
      %809 = vst.msk [vmem:[%s280 + $0x50] sm:$0xff] %vm798, %v776
      %810 = vst.msk [vmem:[%s280 + $0x58] sm:$0xff] %vm798, %v779
      %811 = vst.msk [vmem:[%s280 + $0x60] sm:$0xff] %vm798, %v784
      %812 = vst.msk [vmem:[%s280 + $0x68] sm:$0xff] %vm798, %v787
      %813 = vst.msk [vmem:[%s280 + $0x70] sm:$0xff] %vm798, %v792
      %814 = vst.msk [vmem:[%s280 + $0x78] sm:$0xff] %vm798, %v795
      %s815 = smul.u32 16, %s18
      %p816 = scmp.lt.s32.totalorder %s815, 31
      %s817 = scalar_select %p816, %s815, 31
      %s818 = smul.addr %s817, 8
      %s819 = scalar_lea.vmem %s7, %s818
      // Predicated region
      $region49: #{tpu_custom_call.1} parent=47 // pred_check
        %p820 = pneg %p188
      $region50: #{tpu_custom_call.1} parent=47 // pred_check_branch
        %822 = sbr.rel (%p820) target = $region52
      $region51: #{tpu_custom_call.1} parent=47 // pred_region
        %s823 = smul.u32 16, %s18
      $region52: #{tpu_custom_call.1} parent=47 // pred_fallthru
        _
    $region48: #{tpu_custom_call.1} parent=5 // pred_fallthru
      _
    %p824 = scmp.le.s32.totalorder 2, %s13
    // Predicated region
    $region53: #{tpu_custom_call.1} parent=5 // pred_check
      %p825 = pneg %p824
    $region54: #{tpu_custom_call.1} parent=5 // pred_check_branch
      %827 = sbr.rel (%p825) target = $region56
    $region55: #{tpu_custom_call.1} parent=5 // pred_region
      %s828 = ssub.s32 %s13, 2
      // Predicated region
      $region57: #{tpu_custom_call.1} parent=55 // pred_check
        %p829 = pneg %p194
      $region58: #{tpu_custom_call.1} parent=55 // pred_check_branch
        %831 = sbr.rel (%p829) target = $region60
      $region59: #{tpu_custom_call.1} parent=55 // pred_region
        %s832 = smul.u32 16, %s19
        %p833 = scmp.lt.s32.totalorder %s832, 31
        %s834 = scalar_select %p833, %s832, 31
        %s835 = smul.addr %s834, 8
        %s836 = scalar_lea.vmem %s7, %s835
      $region60: #{tpu_custom_call.1} parent=55 // pred_fallthru
        _
    $region56: #{tpu_custom_call.1} parent=5 // pred_fallthru
      _
  $region6: #{tpu_custom_call.1} parent=0 // loop_footer
    %s17 = sadd.s32 1, %s13
  $region7: #{tpu_custom_call.1} parent=0 // loop_footer_branch
    %12 = sbr.rel target = $region3
  $region8: #{tpu_custom_call.1} parent=0 // loop_exit
    _

</llo_original>
